<compile_context>
chip_gen: v7x
topology: tpu7x:2x2x1
jax: 0.10.0
libtpu: 0.0.40
codegen_flags: <defaults>
</compile_context>

<pallas_src>
import functools

import jax
import jax.numpy as jnp
from jax.experimental import pallas as pl
from jax.experimental.pallas import tpu as pltpu


def _parc_kernel(x_ref, wc_ref, add_ref, o_ref, *, type_h):
    # x_ref  : (Cb, H, W)  input spatial block for Cb channels of one batch
    # wc_ref : (Cb, K, K)  fp32 per-channel circulant conv matrix
    # add_ref: (Cb, K, 1) for 'H' / (Cb, 1, K) for 'W'  fp32 bias (+ conv(pe))
    # o_ref  : (Cb, H, W)
    xv = x_ref[...].astype(jnp.float32)
    wc = wc_ref[...]
    if type_h:
        # out[c, h, w] = sum_k wc[c, h, k] * x[c, k, w]   (conv along H)
        acc = jnp.einsum("chk,ckw->chw", wc, xv,
                         preferred_element_type=jnp.float32)
    else:
        # out[c, h, w] = sum_k x[c, h, k] * wc[c, k, w]   (conv along W)
        acc = jnp.einsum("chk,ckw->chw", xv, wc,
                         preferred_element_type=jnp.float32)
    o_ref[...] = (acc + add_ref[...]).astype(o_ref.dtype)


def _pick_channel_block(C, H, W, K, x_itemsize,
                        budget_bytes=8 << 20, max_cb=256):
    """Largest divisor of C whose per-step VMEM footprint fits the budget.

    Per channel and per pipeline stage we hold: x block + out block (x dtype)
    plus wc (K*K fp32) and add (K fp32); BlockSpec double-buffers everything.
    """
    per_chan = 2 * (2 * H * W * x_itemsize + (K * K + K) * 4)
    cb = min(C, max_cb, max(1, budget_bytes // max(1, per_chan)))
    while C % cb != 0:
        cb -= 1
    return cb


def parc_operator(x, pe, weight, bias, *, type_="H", use_pe=True):
    """JAX/Pallas equivalent of ParC_operator.forward (NCHW layout).

    x      : (B, C, H, W)
    pe     : (1, C, K, 1) for type 'H', (1, C, 1, K) for type 'W' (or None)
    weight : (C, 1, K, 1) for type 'H', (C, 1, 1, K) for type 'W'
    bias   : (C,)
    """
    if type_ not in ("H", "W"):
        raise ValueError(f"type_ must be 'H' or 'W', got {type_!r}")
    B, C, H, W = x.shape
    type_h = type_ == "H"
    K = weight.shape[2] if type_h else weight.shape[3]
    if type_h and H != K:
        raise ValueError(f"H ({H}) must equal global kernel size ({K}) for 'H'")
    if (not type_h) and W != K:
        raise ValueError(f"W ({W}) must equal global kernel size ({K}) for 'W'")

    taps = weight.reshape(C, K).astype(jnp.float32)   # per-channel conv taps
    b32 = bias.astype(jnp.float32)

    # Per-channel circulant matrix (fp32, built once on host/XLA side).
    idx = jnp.arange(K)
    if type_h:
        # wc[c, h, k] = taps[c, (k - h) % K]  ;  out = wc @ x (contract k == H)
        shift = (idx[None, :] - idx[:, None]) % K
    else:
        # wc[c, k, w] = taps[c, (k - w) % K]  ;  out = x @ wc (contract k == W)
        shift = (idx[:, None] - idx[None, :]) % K
    wc = taps[:, shift]                               # (C, K, K) fp32

    # Fold bias (+ conv(pe) when use_pe) into a (C, K) additive term.
    add = jnp.broadcast_to(b32[:, None], (C, K))
    if use_pe:
        pe_flat = pe.reshape(C, K).astype(jnp.float32)
        if type_h:
            add = add + jnp.einsum("chk,ck->ch", wc, pe_flat)
        else:
            add = add + jnp.einsum("ck,ckw->cw", pe_flat, wc)
    add3 = add.reshape((C, K, 1) if type_h else (C, 1, K)).astype(jnp.float32)

    Cb = _pick_channel_block(C, H, W, K, x_itemsize=x.dtype.itemsize)
    add_block = (Cb, K, 1) if type_h else (Cb, 1, K)

    # Grid: channel blocks outer, batch inner -> wc / add block indices stay
    # constant across the inner batch loop and are not re-DMA'd per batch.
    grid = (C // Cb, B)

    out = pl.pallas_call(
        functools.partial(_parc_kernel, type_h=type_h),
        out_shape=jax.ShapeDtypeStruct((B, C, H, W), x.dtype),
        grid_spec=pltpu.PrefetchScalarGridSpec(
            num_scalar_prefetch=0,
            grid=grid,
            in_specs=[
                pl.BlockSpec((pl.Squeezed(), Cb, H, W),
                             lambda c, b: (b, c, 0, 0)),
                pl.BlockSpec((Cb, K, K), lambda c, b: (c, 0, 0)),
                pl.BlockSpec(add_block, lambda c, b: (c, 0, 0)),
            ],
            out_specs=pl.BlockSpec((pl.Squeezed(), Cb, H, W),
                                   lambda c, b: (b, c, 0, 0)),
        ),
        compiler_params=pltpu.CompilerParams(
            dimension_semantics=("parallel", "parallel")),
    )(x, wc, add3)
    return out


if __name__ == "__main__":
    # dim=4 channels, global_kernel_size=16, batch=2
    B, C, K = 2, 4, 16
    key = jax.random.PRNGKey(0)
    k1, k2, k3, k4, k5, k6 = jax.random.split(key, 6)

    x = jax.random.normal(k1, (B, C, K, K), jnp.float32)

    # ---------------- type 'H' ----------------
    pe_h = 0.02 * jax.random.normal(k2, (1, C, K, 1), jnp.float32)
    w_h = jax.random.normal(k3, (C, 1, K, 1), jnp.float32) / K
    b_h = 0.1 * jax.random.normal(k4, (C,), jnp.float32)

    out_h = jax.block_until_ready(
        parc_operator(x, pe_h, w_h, b_h, type_="H", use_pe=True))

    xp_h = x + pe_h
    ref_h = jnp.zeros_like(x)
    for r in range(K):
        ref_h = ref_h + w_h[:, 0, r, 0][None, :, None, None] * jnp.roll(xp_h, -r, axis=2)
    ref_h = ref_h + b_h[None, :, None, None]
    assert out_h.shape == (B, C, K, K)
    assert jnp.allclose(out_h, ref_h, atol=1e-4, rtol=1e-4), \
        float(jnp.max(jnp.abs(out_h - ref_h)))

    # ---------------- type 'W' (no wrapper transpose) ----------------
    pe_w = 0.02 * jax.random.normal(k5, (1, C, 1, K), jnp.float32)
    w_w = jax.random.normal(k6, (C, 1, 1, K), jnp.float32) / K
    b_w = 0.1 * jax.random.normal(k4, (C,), jnp.float32)

    out_w = jax.block_until_ready(
        parc_operator(x, pe_w, w_w, b_w, type_="W", use_pe=True))

    xp_w = x + pe_w
    ref_w = jnp.zeros_like(x)
    for r in range(K):
        ref_w = ref_w + w_w[:, 0, 0, r][None, :, None, None] * jnp.roll(xp_w, -r, axis=3)
    ref_w = ref_w + b_w[None, :, None, None]
    assert jnp.allclose(out_w, ref_w, atol=1e-4, rtol=1e-4), \
        float(jnp.max(jnp.abs(out_w - ref_w)))

    # ---------------- use_pe=False specialization ----------------
    out_np = jax.block_until_ready(
        parc_operator(x, None, w_h, b_h, type_="H", use_pe=False))
    ref_np = jnp.zeros_like(x)
    for r in range(K):
        ref_np = ref_np + w_h[:, 0, r, 0][None, :, None, None] * jnp.roll(x, -r, axis=2)
    ref_np = ref_np + b_h[None, :, None, None]
    assert jnp.allclose(out_np, ref_np, atol=1e-4, rtol=1e-4), \
        float(jnp.max(jnp.abs(out_np - ref_np)))

    print("KERNEL_OK")
</pallas_src>

<mosaic_0001>
module attributes {stable_mosaic.version = 11 : i64} {
  func.func @_parc_kernel(%arg0: i32, %arg1: i32, %arg2: memref<1x4x16x16xf32, #tpu.memory_space<vmem>>, %arg3: memref<4x16x16xf32, #tpu.memory_space<vmem>>, %arg4: memref<4x16x1xf32, #tpu.memory_space<vmem>>, %arg5: memref<1x4x16x16xf32, #tpu.memory_space<vmem>>) attributes {dimension_semantics = [#tpu.dimension_semantics<parallel>, #tpu.dimension_semantics<parallel>], iteration_bounds = array<i64: 1, 2>, scalar_prefetch = 0 : i64, scratch_operands = 0 : i64, tpu.core_type = #tpu.core_type<tc>, window_params = [{transform_indices = @transform_0, window_bounds = array<i64: 1, 4, 16, 16>}, {transform_indices = @transform_1, window_bounds = array<i64: 4, 16, 16>}, {transform_indices = @transform_2, window_bounds = array<i64: 4, 16, 1>}, {transform_indices = @transform_3, window_bounds = array<i64: 1, 4, 16, 16>}]} {
    %c0 = arith.constant 0 : index
    %c0_0 = arith.constant 0 : index
    %c0_1 = arith.constant 0 : index
    %c0_2 = arith.constant 0 : index
    %0 = vector.load %arg2[%c0, %c0_0, %c0_1, %c0_2] : memref<1x4x16x16xf32, #tpu.memory_space<vmem>>, vector<1x4x16x16xf32>
    %1 = vector.shape_cast %0 : vector<1x4x16x16xf32> to vector<4x16x16xf32>
    %c0_3 = arith.constant 0 : index
    %c0_4 = arith.constant 0 : index
    %c0_5 = arith.constant 0 : index
    %2 = vector.load %arg3[%c0_3, %c0_4, %c0_5] : memref<4x16x16xf32, #tpu.memory_space<vmem>>, vector<4x16x16xf32>
    "tpu.trace_start"() <{level = 10 : i32, message = "chk,ckw->chw"}> : () -> ()
    %cst = arith.constant dense<0.000000e+00> : vector<4x16x16xf32>
    %3 = tpu.matmul %2, %1, %cst {dimension_numbers = #tpu.dot_dimension_numbers<[2], [1], [1], [2], [0, 0, 0, 1, 1, 2], [0], [0]>} : vector<4x16x16xf32>, vector<4x16x16xf32>, vector<4x16x16xf32> -> vector<4x16x16xf32>
    "tpu.trace_stop"() : () -> ()
    %c0_6 = arith.constant 0 : index
    %c0_7 = arith.constant 0 : index
    %c0_8 = arith.constant 0 : index
    %4 = vector.load %arg4[%c0_6, %c0_7, %c0_8] : memref<4x16x1xf32, #tpu.memory_space<vmem>>, vector<4x16x1xf32>
    %5 = vector.broadcast %4 : vector<4x16x1xf32> to vector<4x16x16xf32>
    %6 = arith.addf %3, %5 : vector<4x16x16xf32>
    %c0_9 = arith.constant 0 : index
    %c0_10 = arith.constant 0 : index
    %c0_11 = arith.constant 0 : index
    %c0_12 = arith.constant 0 : index
    %7 = vector.load %arg5[%c0_9, %c0_10, %c0_11, %c0_12] : memref<1x4x16x16xf32, #tpu.memory_space<vmem>>, vector<1x4x16x16xf32>
    %8 = vector.shape_cast %7 : vector<1x4x16x16xf32> to vector<4x16x16xf32>
    %9 = vector.shape_cast %6 : vector<4x16x16xf32> to vector<1x4x16x16xf32>
    tpu.vector_store %arg5[%c0_9, %c0_10, %c0_11, %c0_12], %9 {strides = array<i32>} : memref<1x4x16x16xf32, #tpu.memory_space<vmem>>, vector<1x4x16x16xf32>,
    return
  }
  func.func @transform_0(%arg0: i32, %arg1: i32) -> (i32, i32, i32, i32) {
    %c0_i32 = arith.constant 0 : i32
    %c0_i32_0 = arith.constant 0 : i32
    %c0_i32_1 = arith.constant 0 : i32
    return %arg1, %arg0, %c0_i32, %c0_i32_0 : i32, i32, i32, i32
  }
  func.func @transform_1(%arg0: i32, %arg1: i32) -> (i32, i32, i32) {
    %c0_i32 = arith.constant 0 : i32
    %c0_i32_0 = arith.constant 0 : i32
    %c0_i32_1 = arith.constant 0 : i32
    return %arg0, %c0_i32, %c0_i32_0 : i32, i32, i32
  }
  func.func @transform_2(%arg0: i32, %arg1: i32) -> (i32, i32, i32) {
    %c0_i32 = arith.constant 0 : i32
    %c0_i32_0 = arith.constant 0 : i32
    %c0_i32_1 = arith.constant 0 : i32
    return %arg0, %c0_i32, %c0_i32_0 : i32, i32, i32
  }
  func.func @transform_3(%arg0: i32, %arg1: i32) -> (i32, i32, i32, i32) {
    %c0_i32 = arith.constant 0 : i32
    %c0_i32_0 = arith.constant 0 : i32
    %c0_i32_1 = arith.constant 0 : i32
    return %arg1, %arg0, %c0_i32, %c0_i32_0 : i32, i32, i32, i32
  }
}

</mosaic_0001>

<llo_original>
// kernel: tpu_custom_call.1
$region0: #{tpu_custom_call.1}
  #allocation0 [shape = 'u32[]', space=smem, size = 0x4, offset = 0x4, fixed_abs, tag = 'smem constant byte address 0x4 - core index']
  #allocation1 [shape = 'u32[144,128]{1,0:T(1,128)}', space=vmem, size = 0x12000, scoped, tag = 'internal scratch']
  %s0 = inlined_call_operand.hbm [shape: f32[2,4,16,16], index: 0, kind: input, shape index: {}]
  %s1 = inlined_call_operand.vmem [shape: f32[4,16,16], index: 1, kind: input, shape index: {}]
  %s2 = inlined_call_operand.vmem [shape: f32[4,16,1], index: 2, kind: input, shape index: {}]
  %s3 = inlined_call_operand.hbm [shape: f32[2,4,16,16], index: 3, kind: output, shape index: {}]
  %s4 = sld [smem:[#allocation0]]
  $region49: #{tpu_custom_call.1} parent=0
    _
  %s6 = ssub.s32 1, %s4
  %s7 = scalar_select 0, %s6, %s4
  $region1: #{tpu_custom_call.1} parent=0
    #allocation2 [shape = 'u8[65536]{0}', space=vmem, size = 0x10000, scoped, tag = 'input window, operand 0']
    #allocation3 [shape = 's32[2]{0}', space=sflag, size = 0x8, scoped, tag = 'scoped memory for tpu_custom_call.1']
    #allocation4 [shape = 's32[2]{0}', space=sflag, size = 0x8, scoped, tag = 'scoped memory for tpu_custom_call.1']
    #allocation5 [shape = 'u8[65536]{0}', space=vmem, size = 0x10000, scoped, tag = 'output window, operand 0']
    %8 = vsyncpa [#allocation3], 0
    %s9 = scalar_lea.sflag [#allocation3], 1
    %10 = vsyncpa %s9, 0
    %11 = vsyncpa [#allocation4], 0
    %s12 = scalar_lea.sflag [#allocation4], 1
    %13 = vsyncpa %s12, 0
    loop: start=0, step=1, limit=4
    $region2: #{tpu_custom_call.1} parent=1 // loop_pre_header
      _
    $region3: #{tpu_custom_call.1} parent=1 // loop_header
      %s15 = sphi 0, %s19
      %p16 = scmp.ge.s32.totalorder %s15, 4
      %s22 = sphi 0, %s34
      %s23 = sphi 0, %s30
      %s24 = sphi 0, %s22
      %s25 = sphi 0, %s23
      %s26 = sphi 0, %s24
      %s27 = sphi 0, %s25
      %s39 = sphi 0, %s41
      %s42 = sphi 0, %s39
      %s43 = sphi 0, %s42
      %s59 = sphi 0, %s43
      %s65 = sphi 0, %s67
      %s68 = sphi 0, %s65
      %s69 = sphi 0, %s68
      %s85 = sphi 0, %s69
      %s91 = sphi 0, %s93
      %s94 = sphi 0, %s91
      %s95 = sphi 0, %s94
      %s111 = sphi 0, %s95
      %s119 = sphi 0, %s121
      %s122 = sphi 0, %s119
      %s123 = sphi 0, %s122
      %s139 = sphi 0, %s123
    $region4: #{tpu_custom_call.1} parent=1 // loop_header_branch
      %18 = sbr.rel (%p16) target = $region8
    $region5: #{tpu_custom_call.1} parent=1 // loop_body
      %s20 = ssub.s32 %s15, 1
      %s21 = ssub.s32 %s15, 2
      %s28 = sadd.s32 1, %s23
      %p29 = scmp.ge.s32.totalorder %s28, 2
      %s30 = scalar_select %p29, 0, %s28
      %s31 = sadd.s32 1, %s22
      %s32 = scalar_select %p29, %s31, %s22
      %p33 = scmp.ge.s32.totalorder %s32, 1
      %s34 = scalar_select %p33, 0, %s32
      %s35 = ssub.s32 %s23, %s30
      %s36 = ssub.s32 %s22, %s34
      %s37 = sor.u32 %s35, %s36
      %p38 = scmp.eq.s32.totalorder %s37, 0
      %s40 = sadd.s32 %s39, 1
      %s41 = scalar_select %p38, %s39, %s40
      %p44 = pneg %p38
      %p45 = scmp.eq.s32.totalorder %s15, 1
      %p46 = por %p44, %p45
      %p47 = scmp.ne.s32.totalorder %s39, %s42
      %p48 = scmp.eq.s32.totalorder %s15, 0
      %p49 = por %p47, %p48
      %p50 = scmp.ne.s32.totalorder %s39, %s42
      %p51 = scmp.eq.s32.totalorder %s20, 1
      %p52 = por %p50, %p51
      %p53 = scmp.ne.s32.totalorder %s42, %s43
      %p54 = scmp.eq.s32.totalorder %s20, 0
      %p55 = por %p53, %p54
      %p56 = scmp.ne.s32.totalorder %s42, %s43
      %p57 = scmp.eq.s32.totalorder %s21, 1
      %p58 = por %p56, %p57
      %p60 = scmp.ne.s32.totalorder %s43, %s59
      %p61 = scmp.eq.s32.totalorder %s21, 0
      %p62 = por %p60, %p61
      %s63 = ssub.s32 %s22, %s34
      %p64 = scmp.eq.s32.totalorder %s63, 0
      %s66 = sadd.s32 %s65, 1
      %s67 = scalar_select %p64, %s65, %s66
      %p70 = pneg %p64
      %p71 = scmp.eq.s32.totalorder %s15, 1
      %p72 = por %p70, %p71
      %p73 = scmp.ne.s32.totalorder %s65, %s68
      %p74 = scmp.eq.s32.totalorder %s15, 0
      %p75 = por %p73, %p74
      %p76 = scmp.ne.s32.totalorder %s65, %s68
      %p77 = scmp.eq.s32.totalorder %s20, 1
      %p78 = por %p76, %p77
      %p79 = scmp.ne.s32.totalorder %s68, %s69
      %p80 = scmp.eq.s32.totalorder %s20, 0
      %p81 = por %p79, %p80
      %p82 = scmp.ne.s32.totalorder %s68, %s69
      %p83 = scmp.eq.s32.totalorder %s21, 1
      %p84 = por %p82, %p83
      %p86 = scmp.ne.s32.totalorder %s69, %s85
      %p87 = scmp.eq.s32.totalorder %s21, 0
      %p88 = por %p86, %p87
      %s89 = ssub.s32 %s22, %s34
      %p90 = scmp.eq.s32.totalorder %s89, 0
      %s92 = sadd.s32 %s91, 1
      %s93 = scalar_select %p90, %s91, %s92
      %p96 = pneg %p90
      %p97 = scmp.eq.s32.totalorder %s15, 1
      %p98 = por %p96, %p97
      %p99 = scmp.ne.s32.totalorder %s91, %s94
      %p100 = scmp.eq.s32.totalorder %s15, 0
      %p101 = por %p99, %p100
      %p102 = scmp.ne.s32.totalorder %s91, %s94
      %p103 = scmp.eq.s32.totalorder %s20, 1
      %p104 = por %p102, %p103
      %p105 = scmp.ne.s32.totalorder %s94, %s95
      %p106 = scmp.eq.s32.totalorder %s20, 0
      %p107 = por %p105, %p106
      %p108 = scmp.ne.s32.totalorder %s94, %s95
      %p109 = scmp.eq.s32.totalorder %s21, 1
      %p110 = por %p108, %p109
      %p112 = scmp.ne.s32.totalorder %s95, %s111
      %p113 = scmp.eq.s32.totalorder %s21, 0
      %p114 = por %p112, %p113
      %s115 = ssub.s32 %s23, %s30
      %s116 = ssub.s32 %s22, %s34
      %s117 = sor.u32 %s115, %s116
      %p118 = scmp.eq.s32.totalorder %s117, 0
      %s120 = sadd.s32 %s119, 1
      %s121 = scalar_select %p118, %s119, %s120
      %p124 = pneg %p118
      %p125 = scmp.eq.s32.totalorder %s15, 1
      %p126 = por %p124, %p125
      %p127 = scmp.ne.s32.totalorder %s119, %s122
      %p128 = scmp.eq.s32.totalorder %s15, 0
      %p129 = por %p127, %p128
      %p130 = scmp.ne.s32.totalorder %s119, %s122
      %p131 = scmp.eq.s32.totalorder %s20, 1
      %p132 = por %p130, %p131
      %p133 = scmp.ne.s32.totalorder %s122, %s123
      %p134 = scmp.eq.s32.totalorder %s20, 0
      %p135 = por %p133, %p134
      %p136 = scmp.ne.s32.totalorder %s122, %s123
      %p137 = scmp.eq.s32.totalorder %s21, 1
      %p138 = por %p136, %p137
      %p140 = scmp.ne.s32.totalorder %s123, %s139
      %p141 = scmp.eq.s32.totalorder %s21, 0
      %p142 = por %p140, %p141
      %p143 = scmp.le.s32.totalorder 1, %s15
      %p144 = scmp.lt.s32.totalorder %s15, 3
      %p145 = pnand %p143, %p144
      %p146 = pneg %p145
      // Predicated region
      $region9: #{tpu_custom_call.1} parent=5 // pred_check
        _
      $region10: #{tpu_custom_call.1} parent=5 // pred_check_branch
        %148 = sbr.rel (%p145) target = $region12
      $region11: #{tpu_custom_call.1} parent=5 // pred_region
        %s149 = ssub.s32 %s15, 1
        // Predicated region
        $region13: #{tpu_custom_call.1} parent=11 // pred_check
          %p150 = pneg %p81
        $region14: #{tpu_custom_call.1} parent=11 // pred_check_branch
          %152 = sbr.rel (%p150) target = $region16
        $region15: #{tpu_custom_call.1} parent=11 // pred_region
          %s153 = smul.u32 4, %s24
          %p154 = scmp.lt.s32.totalorder %s153, 3
          %s155 = scalar_select %p154, %s153, 3
          %s156 = smul.addr %s155, 2
          %s157 = smul.addr %s156, 8
          %s158 = scalar_lea.vmem %s1, %s157
          %s159 = smul.u32 4, %s24
        $region16: #{tpu_custom_call.1} parent=11 // pred_fallthru
          _
        // Predicated region
        $region17: #{tpu_custom_call.1} parent=11 // pred_check
          %p160 = pneg %p107
        $region18: #{tpu_custom_call.1} parent=11 // pred_check_branch
          %162 = sbr.rel (%p160) target = $region20
        $region19: #{tpu_custom_call.1} parent=11 // pred_region
          %s163 = smul.u32 4, %s24
          %p164 = scmp.lt.s32.totalorder %s163, 3
          %s165 = scalar_select %p164, %s163, 3
          %s166 = smul.addr %s165, 2
          %s167 = smul.addr %s166, 8
          %s168 = scalar_lea.vmem %s2, %s167
          %s169 = smul.u32 4, %s24
        $region20: #{tpu_custom_call.1} parent=11 // pred_fallthru
          _
      $region12: #{tpu_custom_call.1} parent=5 // pred_fallthru
        _
      %p170 = scmp.lt.s32.totalorder %s15, 2
      // Predicated region
      $region21: #{tpu_custom_call.1} parent=5 // pred_check
        %p171 = pneg %p170
      $region22: #{tpu_custom_call.1} parent=5 // pred_check_branch
        %173 = sbr.rel (%p171) target = $region24
      $region23: #{tpu_custom_call.1} parent=5 // pred_region
        // Predicated region
        $region25: #{tpu_custom_call.1} parent=23 // pred_check
          %p174 = pneg %p49
        $region26: #{tpu_custom_call.1} parent=23 // pred_check_branch
          %176 = sbr.rel (%p174) target = $region28
        $region27: #{tpu_custom_call.1} parent=23 // pred_region
          %s177 = sand.u32 %s39, 1
          %s178 = scalar_lea.sflag [#allocation3], %s177
          %s179 = sand.u32 %s39, 1
          %s180 = smul.addr %s179, 64
          %s181 = scalar_lea.vmem [#allocation2], %s180
          %s182 = smul.u32 4, %s22
          %s184 = ssub.s32 1024, 1024
          %185 = vsyncadd %s178, %s184
          %s186 = smul.addr %s182, 2
          %s187 = smul.addr %s23, 8
          %s188 = sadd.s32 %s186, %s187
          %s189 = smul.addr %s188, 128
          %s190 = scalar_lea.hbm %s0, %s189
          %s191 = sshll.u32 %s181, 4
          %s192 = int_to_ptr.vmem [resolvable:$true] %s191
          %197 = dma.hbm_to_vmem [thread:$0]  %s190, 1024, %s192, %s178, 128, 128, 8
        $region28: #{tpu_custom_call.1} parent=23 // pred_fallthru
          _
      $region24: #{tpu_custom_call.1} parent=5 // pred_fallthru
        _
      %p198 = scmp.le.s32.totalorder 1, %s15
      %p199 = scmp.lt.s32.totalorder %s15, 3
      %p200 = pnand %p198, %p199
      %p201 = pneg %p200
      // Predicated region
      $region29: #{tpu_custom_call.1} parent=5 // pred_check
        _
      $region30: #{tpu_custom_call.1} parent=5 // pred_check_branch
        %203 = sbr.rel (%p200) target = $region32
      $region31: #{tpu_custom_call.1} parent=5 // pred_region
        %s204 = ssub.s32 %s15, 1
        %s205 = sand.u32 %s42, 1
        %s206 = scalar_lea.sflag [#allocation3], %s205
        %s207 = sand.u32 %s42, 1
        %s208 = smul.addr %s207, 64
        %s209 = scalar_lea.vmem [#allocation2], %s208
        // Predicated region
        $region33: #{tpu_custom_call.1} parent=31 // pred_check
          %p210 = pneg %p55
        $region34: #{tpu_custom_call.1} parent=31 // pred_check_branch
          %212 = sbr.rel (%p210) target = $region36
        $region35: #{tpu_custom_call.1} parent=31 // pred_region
          %213 = dma.done %s206, 1024
        $region36: #{tpu_custom_call.1} parent=31 // pred_fallthru
          _
        %s214 = sand.u32 %s42, 1
        %s215 = scalar_lea.sflag [#allocation3], %s214
        %s216 = sand.u32 %s42, 1
        %s217 = smul.addr %s216, 64
        %s218 = scalar_lea.vmem [#allocation2], %s217
        %p219 = pneg %p55
        %p220 = pneg %p52
        %s221 = smul.u32 4, %s24
        %p222 = scmp.lt.s32.totalorder %s221, 3
        %s223 = scalar_select %p222, %s221, 3
        %s224 = smul.addr %s223, 2
        %s225 = smul.addr %s224, 8
        %s226 = scalar_lea.vmem %s1, %s225
        %p227 = pneg %p81
        %p228 = pneg %p78
        %s229 = smul.u32 4, %s24
        %p230 = scmp.lt.s32.totalorder %s229, 3
        %s231 = scalar_select %p230, %s229, 3
        %s232 = smul.addr %s231, 2
        %s233 = smul.addr %s232, 8
        %s234 = scalar_lea.vmem %s2, %s233
        %p235 = pneg %p107
        %p236 = pneg %p104
        %p237 = pneg %p135
        %p238 = pneg %p132
        %s239 = sand.u32 %s122, 1
        %s240 = scalar_lea.sflag [#allocation4], %s239
        %s241 = sand.u32 %s122, 1
        %s242 = smul.addr %s241, 64
        %s243 = scalar_lea.vmem [#allocation5], %s242
        %s244 = smul.u32 4, %s24
        %s245 = smul.u32 4, %s24
        %p246 = scmp.lt.s32.totalorder %s245, 3
        %s247 = scalar_select %p246, %s245, 3
        %s248 = smul.addr %s247, 2
        %s249 = smul.addr %s248, 8
        %s250 = scalar_lea.vmem %s1, %s249
        %s251 = smul.u32 4, %s24
        %s252 = smul.u32 4, %s24
        %p253 = scmp.lt.s32.totalorder %s252, 3
        %s254 = scalar_select %p253, %s252, 3
        %s255 = smul.addr %s254, 2
        %s256 = smul.addr %s255, 8
        %s257 = scalar_lea.vmem %s2, %s256
        %s258 = smul.u32 4, %s24
        %s259 = smul.u32 4, %s24
        %v260 = vld [vmem:[%s209] sm:$0xff]
        %v261 = vld [vmem:[%s209 + $0x8] sm:$0xff]
        %v262 = vld [vmem:[%s209 + $0x10] sm:$0xff]
        %v263 = vld [vmem:[%s209 + $0x18] sm:$0xff]
        %v264 = vld [vmem:[%s209 + $0x20] sm:$0xff]
        %v265 = vld [vmem:[%s209 + $0x28] sm:$0xff]
        %v266 = vld [vmem:[%s209 + $0x30] sm:$0xff]
        %v267 = vld [vmem:[%s209 + $0x38] sm:$0xff]
        %v268 = vld [vmem:[%s250] sm:$0xff]
        %v269 = vld [vmem:[%s250 + $0x8] sm:$0xff]
        %v270 = vld [vmem:[%s250 + $0x10] sm:$0xff]
        %v271 = vld [vmem:[%s250 + $0x18] sm:$0xff]
        %v272 = vld [vmem:[%s250 + $0x20] sm:$0xff]
        %v273 = vld [vmem:[%s250 + $0x28] sm:$0xff]
        %v274 = vld [vmem:[%s250 + $0x30] sm:$0xff]
        %v275 = vld [vmem:[%s250 + $0x38] sm:$0xff]
        %v276 = vld [vmem:[%s257] sm:$0xff]
        %v277 = vld [vmem:[%s257 + $0x8] sm:$0xff]
        %v278 = vld [vmem:[%s257 + $0x10] sm:$0xff]
        %v279 = vld [vmem:[%s257 + $0x18] sm:$0xff]
        %v280 = vld [vmem:[%s257 + $0x20] sm:$0xff]
        %v281 = vld [vmem:[%s257 + $0x28] sm:$0xff]
        %v282 = vld [vmem:[%s257 + $0x30] sm:$0xff]
        %v283 = vld [vmem:[%s257 + $0x38] sm:$0xff]
        %285 = vset.pattern.permute.xlu0 0
        %286 = vperm.xlu0 %285, %v276
        %v287 = vpop.permute.xlu0 %286
        %290 = vset.pattern.permute.xlu0 0
        %291 = vperm.xlu0 %290, %v277
        %v292 = vpop.permute.xlu0 %291
        %295 = vset.pattern.permute.xlu0 0
        %296 = vperm.xlu0 %295, %v278
        %v297 = vpop.permute.xlu0 %296
        %300 = vset.pattern.permute.xlu0 0
        %301 = vperm.xlu0 %300, %v279
        %v302 = vpop.permute.xlu0 %301
        %305 = vset.pattern.permute.xlu0 0
        %306 = vperm.xlu0 %305, %v280
        %v307 = vpop.permute.xlu0 %306
        %310 = vset.pattern.permute.xlu0 0
        %311 = vperm.xlu0 %310, %v281
        %v312 = vpop.permute.xlu0 %311
        %315 = vset.pattern.permute.xlu0 0
        %316 = vperm.xlu0 %315, %v282
        %v317 = vpop.permute.xlu0 %316
        %320 = vset.pattern.permute.xlu0 0
        %321 = vperm.xlu0 %320, %v283
        %v322 = vpop.permute.xlu0 %321
        %vm324 = vcmask 130048
        %v326 = vsel %vm324, %v268, 0
        %v329 = vsel %vm324, %v269, 0
        %331 = vmatprep.subr.mxu0 0.0
        %332 = vmatpush1.msra.mxu0 %v260
        %333 = vmatprep.subr.mxu0 0.0
        %334 = vmatpush1.msra.mxu0 %v261
        %335 = vmatprep.subr.mxu0 0.0
        %336 = vmatpush1.msra.mxu0 0.0
        %337 = vmatprep.subr.mxu0 0.0
        %338 = vmatpush1.msra.mxu0 0.0
        %339 = vmatprep.subr.mxu0 0.0
        %340 = vmatpush1.msra.mxu0 0.0
        %341 = vmatprep.subr.mxu0 0.0
        %342 = vmatpush1.msra.mxu0 0.0
        %343 = vmatprep.subr.mxu0 0.0
        %344 = vmatpush1.msra.mxu0 0.0
        %345 = vmatprep.subr.mxu0 0.0
        %346 = vmatpush1.msra.mxu0 0.0
        %347 = vmatprep.subr.mxu0 0.0
        %348 = vmatpush1.msra.mxu0 0.0
        %349 = vmatprep.subr.mxu0 0.0
        %350 = vmatpush1.msra.mxu0 0.0
        %351 = vmatprep.subr.mxu0 0.0
        %352 = vmatpush1.msra.mxu0 0.0
        %353 = vmatprep.subr.mxu0 0.0
        %354 = vmatpush1.msra.mxu0 0.0
        %355 = vmatprep.subr.mxu0 0.0
        %356 = vmatpush1.msra.mxu0 0.0
        %357 = vmatprep.subr.mxu0 0.0
        %358 = vmatpush1.msra.mxu0 0.0
        %359 = vmatprep.subr.mxu0 0.0
        %360 = vmatpush1.msra.mxu0 0.0
        %361 = vmatprep.subr.mxu0 0.0
        %362 = vmatpush1.msra.mxu0 0.0
        %363 = vmatprep.subr.mxu0 0.0
        %364 = vmatpush1.msra.mxu0 0.0
        %365 = vmatprep.subr.mxu0 0.0
        %366 = vmatpush1.msra.mxu0 0.0
        %367 = vmatprep.subr.mxu0 0.0
        %368 = vmatpush1.msra.mxu0 0.0
        %369 = vmatprep.subr.mxu0 0.0
        %370 = vmatpush1.msra.mxu0 0.0
        %371 = vmatprep.subr.mxu0 0.0
        %372 = vmatpush1.msra.mxu0 0.0
        %373 = vmatprep.subr.mxu0 0.0
        %374 = vmatpush1.msra.mxu0 0.0
        %375 = vmatprep.subr.mxu0 0.0
        %376 = vmatpush1.msra.mxu0 0.0
        %377 = vmatprep.subr.mxu0 0.0
        %378 = vmatpush1.msra.mxu0 0.0
        %379 = vmatprep.subr.mxu0 0.0
        %380 = vmatpush1.msra.mxu0 0.0
        %381 = vmatprep.subr.mxu0 0.0
        %382 = vmatpush1.msra.mxu0 0.0
        %383 = vmatprep.subr.mxu0 0.0
        %384 = vmatpush1.msra.mxu0 0.0
        %385 = vmatprep.subr.mxu0 0.0
        %386 = vmatpush1.msra.mxu0 0.0
        %387 = vmatprep.subr.mxu0 0.0
        %388 = vmatpush1.msra.mxu0 0.0
        %389 = vmatprep.subr.mxu0 0.0
        %390 = vmatpush1.msra.mxu0 0.0
        %391 = vmatprep.subr.mxu0 0.0
        %392 = vmatpush1.msra.mxu0 0.0
        %393 = vmatprep.subr.mxu0 0.0
        %394 = vmatpush1.msra.mxu0 0.0
        %395 = vmatprep.mubr.f32.mxu0 0.0
        %396 = vmatmul.mubr.f32.gmra.mrb[0].mxu0 %v326
        %v397 = vpop.f32.mrb[0].mxu0
        %v398 = vadd.f32 %v287, %v397
        %v399 = vpop.f32.mrb[0].mxu0
        %400 = vmatprep.mubr.f32.mxu0 0.0
        %401 = vmatmul.mubr.f32.gmra.mrb[0].mxu0 %v329
        %v402 = vpop.f32.mrb[0].mxu0
        %v403 = vadd.f32 %v292, %v402
        %v404 = vpop.f32.mrb[0].mxu0
        %405 = vdwg.mxu0
        %v407 = vsel %vm324, %v270, 0
        %v410 = vsel %vm324, %v271, 0
        %412 = vmatprep.subr.mxu0 0.0
        %413 = vmatpush1.msra.mxu0 %v262
        %414 = vmatprep.subr.mxu0 0.0
        %415 = vmatpush1.msra.mxu0 %v263
        %416 = vmatprep.subr.mxu0 0.0
        %417 = vmatpush1.msra.mxu0 0.0
        %418 = vmatprep.subr.mxu0 0.0
        %419 = vmatpush1.msra.mxu0 0.0
        %420 = vmatprep.subr.mxu0 0.0
        %421 = vmatpush1.msra.mxu0 0.0
        %422 = vmatprep.subr.mxu0 0.0
        %423 = vmatpush1.msra.mxu0 0.0
        %424 = vmatprep.subr.mxu0 0.0
        %425 = vmatpush1.msra.mxu0 0.0
        %426 = vmatprep.subr.mxu0 0.0
        %427 = vmatpush1.msra.mxu0 0.0
        %428 = vmatprep.subr.mxu0 0.0
        %429 = vmatpush1.msra.mxu0 0.0
        %430 = vmatprep.subr.mxu0 0.0
        %431 = vmatpush1.msra.mxu0 0.0
        %432 = vmatprep.subr.mxu0 0.0
        %433 = vmatpush1.msra.mxu0 0.0
        %434 = vmatprep.subr.mxu0 0.0
        %435 = vmatpush1.msra.mxu0 0.0
        %436 = vmatprep.subr.mxu0 0.0
        %437 = vmatpush1.msra.mxu0 0.0
        %438 = vmatprep.subr.mxu0 0.0
        %439 = vmatpush1.msra.mxu0 0.0
        %440 = vmatprep.subr.mxu0 0.0
        %441 = vmatpush1.msra.mxu0 0.0
        %442 = vmatprep.subr.mxu0 0.0
        %443 = vmatpush1.msra.mxu0 0.0
        %444 = vmatprep.subr.mxu0 0.0
        %445 = vmatpush1.msra.mxu0 0.0
        %446 = vmatprep.subr.mxu0 0.0
        %447 = vmatpush1.msra.mxu0 0.0
        %448 = vmatprep.subr.mxu0 0.0
        %449 = vmatpush1.msra.mxu0 0.0
        %450 = vmatprep.subr.mxu0 0.0
        %451 = vmatpush1.msra.mxu0 0.0
        %452 = vmatprep.subr.mxu0 0.0
        %453 = vmatpush1.msra.mxu0 0.0
        %454 = vmatprep.subr.mxu0 0.0
        %455 = vmatpush1.msra.mxu0 0.0
        %456 = vmatprep.subr.mxu0 0.0
        %457 = vmatpush1.msra.mxu0 0.0
        %458 = vmatprep.subr.mxu0 0.0
        %459 = vmatpush1.msra.mxu0 0.0
        %460 = vmatprep.subr.mxu0 0.0
        %461 = vmatpush1.msra.mxu0 0.0
        %462 = vmatprep.subr.mxu0 0.0
        %463 = vmatpush1.msra.mxu0 0.0
        %464 = vmatprep.subr.mxu0 0.0
        %465 = vmatpush1.msra.mxu0 0.0
        %466 = vmatprep.subr.mxu0 0.0
        %467 = vmatpush1.msra.mxu0 0.0
        %468 = vmatprep.subr.mxu0 0.0
        %469 = vmatpush1.msra.mxu0 0.0
        %470 = vmatprep.subr.mxu0 0.0
        %471 = vmatpush1.msra.mxu0 0.0
        %472 = vmatprep.subr.mxu0 0.0
        %473 = vmatpush1.msra.mxu0 0.0
        %474 = vmatprep.subr.mxu0 0.0
        %475 = vmatpush1.msra.mxu0 0.0
        %476 = vmatprep.mubr.f32.mxu0 0.0
        %477 = vmatmul.mubr.f32.gmra.mrb[0].mxu0 %v407
        %v478 = vpop.f32.mrb[0].mxu0
        %v479 = vadd.f32 %v297, %v478
        %v480 = vpop.f32.mrb[0].mxu0
        %481 = vmatprep.mubr.f32.mxu0 0.0
        %482 = vmatmul.mubr.f32.gmra.mrb[0].mxu0 %v410
        %v483 = vpop.f32.mrb[0].mxu0
        %v484 = vadd.f32 %v302, %v483
        %v485 = vpop.f32.mrb[0].mxu0
        %486 = vdwg.mxu0
        %v488 = vsel %vm324, %v272, 0
        %v491 = vsel %vm324, %v273, 0
        %493 = vmatprep.subr.mxu0 0.0
        %494 = vmatpush1.msra.mxu0 %v264
        %495 = vmatprep.subr.mxu0 0.0
        %496 = vmatpush1.msra.mxu0 %v265
        %497 = vmatprep.subr.mxu0 0.0
        %498 = vmatpush1.msra.mxu0 0.0
        %499 = vmatprep.subr.mxu0 0.0
        %500 = vmatpush1.msra.mxu0 0.0
        %501 = vmatprep.subr.mxu0 0.0
        %502 = vmatpush1.msra.mxu0 0.0
        %503 = vmatprep.subr.mxu0 0.0
        %504 = vmatpush1.msra.mxu0 0.0
        %505 = vmatprep.subr.mxu0 0.0
        %506 = vmatpush1.msra.mxu0 0.0
        %507 = vmatprep.subr.mxu0 0.0
        %508 = vmatpush1.msra.mxu0 0.0
        %509 = vmatprep.subr.mxu0 0.0
        %510 = vmatpush1.msra.mxu0 0.0
        %511 = vmatprep.subr.mxu0 0.0
        %512 = vmatpush1.msra.mxu0 0.0
        %513 = vmatprep.subr.mxu0 0.0
        %514 = vmatpush1.msra.mxu0 0.0
        %515 = vmatprep.subr.mxu0 0.0
        %516 = vmatpush1.msra.mxu0 0.0
        %517 = vmatprep.subr.mxu0 0.0
        %518 = vmatpush1.msra.mxu0 0.0
        %519 = vmatprep.subr.mxu0 0.0
        %520 = vmatpush1.msra.mxu0 0.0
        %521 = vmatprep.subr.mxu0 0.0
        %522 = vmatpush1.msra.mxu0 0.0
        %523 = vmatprep.subr.mxu0 0.0
        %524 = vmatpush1.msra.mxu0 0.0
        %525 = vmatprep.subr.mxu0 0.0
        %526 = vmatpush1.msra.mxu0 0.0
        %527 = vmatprep.subr.mxu0 0.0
        %528 = vmatpush1.msra.mxu0 0.0
        %529 = vmatprep.subr.mxu0 0.0
        %530 = vmatpush1.msra.mxu0 0.0
        %531 = vmatprep.subr.mxu0 0.0
        %532 = vmatpush1.msra.mxu0 0.0
        %533 = vmatprep.subr.mxu0 0.0
        %534 = vmatpush1.msra.mxu0 0.0
        %535 = vmatprep.subr.mxu0 0.0
        %536 = vmatpush1.msra.mxu0 0.0
        %537 = vmatprep.subr.mxu0 0.0
        %538 = vmatpush1.msra.mxu0 0.0
        %539 = vmatprep.subr.mxu0 0.0
        %540 = vmatpush1.msra.mxu0 0.0
        %541 = vmatprep.subr.mxu0 0.0
        %542 = vmatpush1.msra.mxu0 0.0
        %543 = vmatprep.subr.mxu0 0.0
        %544 = vmatpush1.msra.mxu0 0.0
        %545 = vmatprep.subr.mxu0 0.0
        %546 = vmatpush1.msra.mxu0 0.0
        %547 = vmatprep.subr.mxu0 0.0
        %548 = vmatpush1.msra.mxu0 0.0
        %549 = vmatprep.subr.mxu0 0.0
        %550 = vmatpush1.msra.mxu0 0.0
        %551 = vmatprep.subr.mxu0 0.0
        %552 = vmatpush1.msra.mxu0 0.0
        %553 = vmatprep.subr.mxu0 0.0
        %554 = vmatpush1.msra.mxu0 0.0
        %555 = vmatprep.subr.mxu0 0.0
        %556 = vmatpush1.msra.mxu0 0.0
        %557 = vmatprep.mubr.f32.mxu0 0.0
        %558 = vmatmul.mubr.f32.gmra.mrb[0].mxu0 %v488
        %v559 = vpop.f32.mrb[0].mxu0
        %v560 = vadd.f32 %v307, %v559
        %v561 = vpop.f32.mrb[0].mxu0
        %562 = vmatprep.mubr.f32.mxu0 0.0
        %563 = vmatmul.mubr.f32.gmra.mrb[0].mxu0 %v491
        %v564 = vpop.f32.mrb[0].mxu0
        %v565 = vadd.f32 %v312, %v564
        %v566 = vpop.f32.mrb[0].mxu0
        %567 = vdwg.mxu0
        %v569 = vsel %vm324, %v274, 0
        %v572 = vsel %vm324, %v275, 0
        %574 = vmatprep.subr.mxu0 0.0
        %575 = vmatpush1.msra.mxu0 %v266
        %576 = vmatprep.subr.mxu0 0.0
        %577 = vmatpush1.msra.mxu0 %v267
        %578 = vmatprep.subr.mxu0 0.0
        %579 = vmatpush1.msra.mxu0 0.0
        %580 = vmatprep.subr.mxu0 0.0
        %581 = vmatpush1.msra.mxu0 0.0
        %582 = vmatprep.subr.mxu0 0.0
        %583 = vmatpush1.msra.mxu0 0.0
        %584 = vmatprep.subr.mxu0 0.0
        %585 = vmatpush1.msra.mxu0 0.0
        %586 = vmatprep.subr.mxu0 0.0
        %587 = vmatpush1.msra.mxu0 0.0
        %588 = vmatprep.subr.mxu0 0.0
        %589 = vmatpush1.msra.mxu0 0.0
        %590 = vmatprep.subr.mxu0 0.0
        %591 = vmatpush1.msra.mxu0 0.0
        %592 = vmatprep.subr.mxu0 0.0
        %593 = vmatpush1.msra.mxu0 0.0
        %594 = vmatprep.subr.mxu0 0.0
        %595 = vmatpush1.msra.mxu0 0.0
        %596 = vmatprep.subr.mxu0 0.0
        %597 = vmatpush1.msra.mxu0 0.0
        %598 = vmatprep.subr.mxu0 0.0
        %599 = vmatpush1.msra.mxu0 0.0
        %600 = vmatprep.subr.mxu0 0.0
        %601 = vmatpush1.msra.mxu0 0.0
        %602 = vmatprep.subr.mxu0 0.0
        %603 = vmatpush1.msra.mxu0 0.0
        %604 = vmatprep.subr.mxu0 0.0
        %605 = vmatpush1.msra.mxu0 0.0
        %606 = vmatprep.subr.mxu0 0.0
        %607 = vmatpush1.msra.mxu0 0.0
        %608 = vmatprep.subr.mxu0 0.0
        %609 = vmatpush1.msra.mxu0 0.0
        %610 = vmatprep.subr.mxu0 0.0
        %611 = vmatpush1.msra.mxu0 0.0
        %612 = vmatprep.subr.mxu0 0.0
        %613 = vmatpush1.msra.mxu0 0.0
        %614 = vmatprep.subr.mxu0 0.0
        %615 = vmatpush1.msra.mxu0 0.0
        %616 = vmatprep.subr.mxu0 0.0
        %617 = vmatpush1.msra.mxu0 0.0
        %618 = vmatprep.subr.mxu0 0.0
        %619 = vmatpush1.msra.mxu0 0.0
        %620 = vmatprep.subr.mxu0 0.0
        %621 = vmatpush1.msra.mxu0 0.0
        %622 = vmatprep.subr.mxu0 0.0
        %623 = vmatpush1.msra.mxu0 0.0
        %624 = vmatprep.subr.mxu0 0.0
        %625 = vmatpush1.msra.mxu0 0.0
        %626 = vmatprep.subr.mxu0 0.0
        %627 = vmatpush1.msra.mxu0 0.0
        %628 = vmatprep.subr.mxu0 0.0
        %629 = vmatpush1.msra.mxu0 0.0
        %630 = vmatprep.subr.mxu0 0.0
        %631 = vmatpush1.msra.mxu0 0.0
        %632 = vmatprep.subr.mxu0 0.0
        %633 = vmatpush1.msra.mxu0 0.0
        %634 = vmatprep.subr.mxu0 0.0
        %635 = vmatpush1.msra.mxu0 0.0
        %636 = vmatprep.subr.mxu0 0.0
        %637 = vmatpush1.msra.mxu0 0.0
        %638 = vmatprep.mubr.f32.mxu0 0.0
        %639 = vmatmul.mubr.f32.gmra.mrb[0].mxu0 %v569
        %v640 = vpop.f32.mrb[0].mxu0
        %v641 = vadd.f32 %v317, %v640
        %v642 = vpop.f32.mrb[0].mxu0
        %643 = vmatprep.mubr.f32.mxu0 0.0
        %644 = vmatmul.mubr.f32.gmra.mrb[0].mxu0 %v572
        %v645 = vpop.f32.mrb[0].mxu0
        %v646 = vadd.f32 %v322, %v645
        %v647 = vpop.f32.mrb[0].mxu0
        %648 = vdwg.mxu0
        %649 = vst.msk [vmem:[%s243] sm:$0xff] %vm324, %v398
        %650 = vst.msk [vmem:[%s243 + $0x8] sm:$0xff] %vm324, %v403
        %651 = vst.msk [vmem:[%s243 + $0x10] sm:$0xff] %vm324, %v479
        %652 = vst.msk [vmem:[%s243 + $0x18] sm:$0xff] %vm324, %v484
        %653 = vst.msk [vmem:[%s243 + $0x20] sm:$0xff] %vm324, %v560
        %654 = vst.msk [vmem:[%s243 + $0x28] sm:$0xff] %vm324, %v565
        %655 = vst.msk [vmem:[%s243 + $0x30] sm:$0xff] %vm324, %v641
        %656 = vst.msk [vmem:[%s243 + $0x38] sm:$0xff] %vm324, %v646
        %s657 = sand.u32 %s122, 1
        %s658 = scalar_lea.sflag [#allocation4], %s657
        %s659 = sand.u32 %s122, 1
        %s660 = smul.addr %s659, 64
        %s661 = scalar_lea.vmem [#allocation5], %s660
        // Predicated region
        $region37: #{tpu_custom_call.1} parent=31 // pred_check
          %p662 = pneg %p132
        $region38: #{tpu_custom_call.1} parent=31 // pred_check_branch
          %664 = sbr.rel (%p662) target = $region40
        $region39: #{tpu_custom_call.1} parent=31 // pred_region
          %s665 = smul.u32 4, %s24
          %s667 = ssub.s32 1024, 1024
          %668 = vsyncadd %s658, %s667
          %s669 = smul.addr %s665, 2
          %s670 = smul.addr %s25, 8
          %s671 = sadd.s32 %s669, %s670
          %s672 = smul.addr %s671, 128
          %s673 = scalar_lea.hbm %s3, %s672
          %s674 = sshll.u32 %s661, 4
          %s675 = int_to_ptr.vmem [resolvable:$true] %s674
          %680 = dma.vmem_to_hbm [thread:$0]  %s675, 1024, %s673, %s658, 128, 128, 8
        $region40: #{tpu_custom_call.1} parent=31 // pred_fallthru
          _
      $region32: #{tpu_custom_call.1} parent=5 // pred_fallthru
        _
      %p681 = scmp.le.s32.totalorder 2, %s15
      // Predicated region
      $region41: #{tpu_custom_call.1} parent=5 // pred_check
        %p682 = pneg %p681
      $region42: #{tpu_custom_call.1} parent=5 // pred_check_branch
        %684 = sbr.rel (%p682) target = $region44
      $region43: #{tpu_custom_call.1} parent=5 // pred_region
        %s685 = ssub.s32 %s15, 2
        // Predicated region
        $region45: #{tpu_custom_call.1} parent=43 // pred_check
          %p686 = pneg %p138
        $region46: #{tpu_custom_call.1} parent=43 // pred_check_branch
          %688 = sbr.rel (%p686) target = $region48
        $region47: #{tpu_custom_call.1} parent=43 // pred_region
          %s689 = sand.u32 %s123, 1
          %s690 = scalar_lea.sflag [#allocation4], %s689
          %s691 = sand.u32 %s123, 1
          %s692 = smul.addr %s691, 64
          %s693 = scalar_lea.vmem [#allocation5], %s692
          %694 = dma.done %s690, 1024
        $region48: #{tpu_custom_call.1} parent=43 // pred_fallthru
          _
      $region44: #{tpu_custom_call.1} parent=5 // pred_fallthru
        _
    $region6: #{tpu_custom_call.1} parent=1 // loop_footer
      %s19 = sadd.s32 1, %s15
    $region7: #{tpu_custom_call.1} parent=1 // loop_footer_branch
      %14 = sbr.rel target = $region3
    $region8: #{tpu_custom_call.1} parent=1 // loop_exit
      _
    %695 = vsyncpa [#allocation3], 1
    %s696 = scalar_lea.sflag [#allocation3], 1
    %697 = vsyncpa %s696, 1
    %698 = vsyncpa [#allocation4], 1
    %s699 = scalar_lea.sflag [#allocation4], 1
    %700 = vsyncpa %s699, 1

</llo_original>
